<compile_context>
chip_gen: v5e
topology: v5e:2x2
jax: 0.10.0
libtpu: 0.0.40
codegen_flags: <defaults>
</compile_context>

<pallas_src>
import functools

import jax
import jax.numpy as jnp
from jax import lax
from jax.experimental import pallas as pl
from jax.experimental.pallas import tpu as pltpu


def _cmp_swap(vals, a, b):
    """Compare-exchange: elementwise min -> vals[a], max -> vals[b]."""
    lo = jnp.minimum(vals[a], vals[b])
    hi = jnp.maximum(vals[a], vals[b])
    vals[a], vals[b] = lo, hi


# Paeth / Devillard median-of-9 network: 19 compare-exchanges, median lands in
# slot 4 (== lower-median index (9-1)//2, matching torch.median for n=9).
_MED9_NET = (
    (1, 2), (4, 5), (7, 8),
    (0, 1), (3, 4), (6, 7),
    (1, 2), (4, 5), (7, 8),
    (0, 3), (5, 8), (4, 7),
    (3, 6), (1, 4), (2, 5),
    (4, 7), (4, 2), (6, 4),
    (4, 2),
)


def _median_select(vals):
    """Elementwise lower-median of a list of same-shaped arrays (pure VPU)."""
    vals = list(vals)
    n = len(vals)
    m = (n - 1) // 2          # torch.median -> lower median
    if n == 1:
        return vals[0]
    if n == 9:
        for a, b in _MED9_NET:
            _cmp_swap(vals, a, b)
        return vals[4]
    # TODO(synk): add the ~99-CE median-of-25 network for 5x5 kernels.
    # General odd n: partial bubble.  After p passes pushing maxima right,
    # positions n-p..n-1 hold the p largest in sorted order, so n-m passes fix
    # rank m exactly.  Dead max-halves of the final passes are DCE'd.
    for p in range(n - m):
        for b in range(0, n - 1 - p):
            _cmp_swap(vals, b, b + 1)
    return vals[m]


def _median_blur_kernel(x_ref, o_ref, pad_ref, *, kh, kw, H, W, ph, pw, SH):
    # x_ref:   (TB, H, W)            unpadded input block (VMEM)
    # o_ref:   (TB, H, W)            output block (VMEM)
    # pad_ref: (TB, H+2ph, W+2pw)    zero-halo scratch (VMEM)
    TB = x_ref.shape[0]
    Wp = W + 2 * pw
    dtype = x_ref.dtype

    # Zero only the thin halo border of the scratch.  Done every grid step:
    # scratch starts as stale VMEM and the grid may be sharded across
    # TensorCores, so a "first step only" guard would be unsafe.  The center
    # is overwritten below, so this is a tiny write.
    if ph > 0:
        pad_ref[:, 0:ph, :] = jnp.zeros((TB, ph, Wp), dtype)
        pad_ref[:, ph + H:ph + H + ph, :] = jnp.zeros((TB, ph, Wp), dtype)
    if pw > 0:
        pad_ref[:, :, 0:pw] = jnp.zeros((TB, H + 2 * ph, pw), dtype)
        pad_ref[:, :, pw + W:pw + W + pw] = jnp.zeros((TB, H + 2 * ph, pw),
                                                      dtype)

    # Copy the unpadded input block into the center of the padded scratch.
    pad_ref[:, ph:ph + H, pw:pw + W] = x_ref[...]

    # Process the output in SH-row strips so only kh*kw strip-sized shifted
    # windows are live at a time (bounds vreg pressure for large planes).
    n_strips = pl.cdiv(H, SH)
    exact = (H % SH == 0)

    def strip_body(s, carry):
        if exact:
            row0 = pl.multiple_of(s * SH, SH)
        else:
            row0 = jnp.minimum(s * SH, H - SH)   # clamp last strip (overlap)
        # One load of the padded strip, then kh*kw static shifted views.
        strip = pad_ref[:, pl.ds(row0, SH + kh - 1), :]
        vals = [strip[:, i:i + SH, j:j + W]
                for i in range(kh) for j in range(kw)]
        med = _median_select(vals)
        o_ref[:, pl.ds(row0, SH), :] = med.astype(o_ref.dtype)
        return carry

    lax.fori_loop(0, n_strips, strip_body, None)


def _pick_tb(bc, H, W, ph, pw, itemsize, budget_bytes=2 * 1024 * 1024):
    """Channels per block: cap per-block VMEM and keep grid length >= 2."""
    # double-buffered in + out blocks, plus the padded scratch
    per_chan = (2 * 2 * H * W + (H + 2 * ph) * (W + 2 * pw)) * itemsize
    tb = max(1, min(bc, budget_bytes // max(per_chan, 1)))
    if tb >= bc and bc >= 2:     # leave >= 2 grid steps for dual-TC (v7x)
        tb = max(1, bc // 2)
    while bc % tb:               # keep the BlockSpec tiling exact
        tb -= 1
    return tb


def median_blur(x, kernel_size):
    """x: (B, C, H, W) float array; kernel_size: (kh, kw) (odd, as in torch)."""
    kh, kw = kernel_size
    B, C, H, W = x.shape
    ph, pw = (kh - 1) // 2, (kw - 1) // 2
    BC = B * C

    x_flat = x.reshape(BC, H, W)
    TB = _pick_tb(BC, H, W, ph, pw, jnp.dtype(x.dtype).itemsize)
    SH = 8 if H >= 8 else H       # sublane-aligned row strips

    # TODO(synk): for W << 128 a channels-last (lane-dense) layout would avoid
    # masked vst's on the output store; kept NCHW-plane layout for simplicity.

    kernel = functools.partial(_median_blur_kernel, kh=kh, kw=kw, H=H, W=W,
                               ph=ph, pw=pw, SH=SH)

    out_flat = pl.pallas_call(
        kernel,
        out_shape=jax.ShapeDtypeStruct((BC, H, W), x.dtype),
        grid_spec=pltpu.PrefetchScalarGridSpec(
            num_scalar_prefetch=0,
            grid=(BC // TB,),
            in_specs=[pl.BlockSpec((TB, H, W), lambda i: (i, 0, 0))],
            out_specs=pl.BlockSpec((TB, H, W), lambda i: (i, 0, 0)),
            scratch_shapes=[
                pltpu.VMEM((TB, H + 2 * ph, W + 2 * pw), x.dtype)],
        ),
        compiler_params=pltpu.CompilerParams(
            dimension_semantics=("parallel",)),
    )(x_flat)

    return out_flat.reshape(B, C, H, W)


def _median_blur_ref(x, kernel_size):
    """Pure-JAX reference matching torch semantics (lower median, zero pad)."""
    kh, kw = kernel_size
    B, C, H, W = x.shape
    ph, pw = (kh - 1) // 2, (kw - 1) // 2
    xp = jnp.pad(x, ((0, 0), (0, 0), (ph, ph), (pw, pw)))
    windows = jnp.stack(
        [xp[:, :, i:i + H, j:j + W] for i in range(kh) for j in range(kw)],
        axis=2)  # (B, C, kh*kw, H, W)
    srt = jnp.sort(windows, axis=2)
    m = (kh * kw - 1) // 2
    return srt[:, :, m, :, :]


if __name__ == "__main__":
    key = jax.random.PRNGKey(0)
    B, C, H, W = 2, 4, 16, 16
    x = jax.random.uniform(key, (B, C, H, W), dtype=jnp.float32)

    # 3x3 (Paeth median-of-9 network path)
    out3 = jax.block_until_ready(median_blur(x, (3, 3)))
    ref3 = _median_blur_ref(x, (3, 3))
    assert out3.shape == (B, C, H, W)
    assert jnp.allclose(out3, ref3, atol=1e-6), "3x3 mismatch vs reference"

    # 5x5 (general partial-selection path, wider halo)
    out5 = jax.block_until_ready(median_blur(x, (5, 5)))
    ref5 = _median_blur_ref(x, (5, 5))
    assert jnp.allclose(out5, ref5, atol=1e-6), "5x5 mismatch vs reference"

    print("KERNEL_OK")
</pallas_src>

<mosaic_0001>
module attributes {stable_mosaic.version = 11 : i64} {
  func.func @_median_blur_kernel(%arg0: i32, %arg1: memref<4x16x16xf32, #tpu.memory_space<vmem>>, %arg2: memref<4x16x16xf32, #tpu.memory_space<vmem>>, %arg3: memref<4x18x18xf32, #tpu.memory_space<vmem>>) attributes {dimension_semantics = [#tpu.dimension_semantics<parallel>], iteration_bounds = array<i64: 2>, scalar_prefetch = 0 : i64, scratch_operands = 1 : i64, tpu.core_type = #tpu.core_type<tc>, window_params = [{transform_indices = @transform_0, window_bounds = array<i64: 4, 16, 16>}, {transform_indices = @transform_1, window_bounds = array<i64: 4, 16, 16>}]} {
    %cst = arith.constant 0.000000e+00 : f32
    %0 = vector.broadcast %cst : f32 to vector<4x1x18xf32>
    %c0 = arith.constant 0 : index
    %c0_0 = arith.constant 0 : index
    %c0_1 = arith.constant 0 : index
    %1 = vector.load %arg3[%c0, %c0_0, %c0_1] : memref<4x18x18xf32, #tpu.memory_space<vmem>>, vector<4x1x18xf32>
    tpu.vector_store %arg3[%c0, %c0_0, %c0_1], %0 {strides = array<i32>} : memref<4x18x18xf32, #tpu.memory_space<vmem>>, vector<4x1x18xf32>,
    %cst_2 = arith.constant 0.000000e+00 : f32
    %2 = vector.broadcast %cst_2 : f32 to vector<4x1x18xf32>
    %c0_3 = arith.constant 0 : index
    %c17 = arith.constant 17 : index
    %c0_4 = arith.constant 0 : index
    %3 = vector.load %arg3[%c0_3, %c17, %c0_4] : memref<4x18x18xf32, #tpu.memory_space<vmem>>, vector<4x1x18xf32>
    tpu.vector_store %arg3[%c0_3, %c17, %c0_4], %2 {strides = array<i32>} : memref<4x18x18xf32, #tpu.memory_space<vmem>>, vector<4x1x18xf32>,
    %cst_5 = arith.constant 0.000000e+00 : f32
    %4 = vector.broadcast %cst_5 : f32 to vector<4x18x1xf32>
    %c0_6 = arith.constant 0 : index
    %c0_7 = arith.constant 0 : index
    %c0_8 = arith.constant 0 : index
    %5 = vector.load %arg3[%c0_6, %c0_7, %c0_8] : memref<4x18x18xf32, #tpu.memory_space<vmem>>, vector<4x18x1xf32>
    tpu.vector_store %arg3[%c0_6, %c0_7, %c0_8], %4 {strides = array<i32>} : memref<4x18x18xf32, #tpu.memory_space<vmem>>, vector<4x18x1xf32>,
    %cst_9 = arith.constant 0.000000e+00 : f32
    %6 = vector.broadcast %cst_9 : f32 to vector<4x18x1xf32>
    %c0_10 = arith.constant 0 : index
    %c0_11 = arith.constant 0 : index
    %c17_12 = arith.constant 17 : index
    %7 = vector.load %arg3[%c0_10, %c0_11, %c17_12] : memref<4x18x18xf32, #tpu.memory_space<vmem>>, vector<4x18x1xf32>
    tpu.vector_store %arg3[%c0_10, %c0_11, %c17_12], %6 {strides = array<i32>} : memref<4x18x18xf32, #tpu.memory_space<vmem>>, vector<4x18x1xf32>,
    %c0_13 = arith.constant 0 : index
    %c0_14 = arith.constant 0 : index
    %c0_15 = arith.constant 0 : index
    %8 = vector.load %arg1[%c0_13, %c0_14, %c0_15] : memref<4x16x16xf32, #tpu.memory_space<vmem>>, vector<4x16x16xf32>
    %c0_16 = arith.constant 0 : index
    %c1 = arith.constant 1 : index
    %c1_17 = arith.constant 1 : index
    %9 = vector.load %arg3[%c0_16, %c1, %c1_17] : memref<4x18x18xf32, #tpu.memory_space<vmem>>, vector<4x16x16xf32>
    tpu.vector_store %arg3[%c0_16, %c1, %c1_17], %8 {strides = array<i32>} : memref<4x18x18xf32, #tpu.memory_space<vmem>>, vector<4x16x16xf32>,
    %c0_i32 = arith.constant 0 : i32
    %c2_i32 = arith.constant 2 : i32
    %10 = arith.addi %c0_i32, %c2_i32 : i32
    %c1_i32 = arith.constant 1 : i32
    scf.for %arg4 = %c0_i32 to %10 step %c1_i32  : i32 {
      %c8_i32 = arith.constant 8 : i32
      %11 = arith.muli %arg4, %c8_i32 : i32
      %12 = tpu.assume_multiple %11, 8 : i32
      %c0_19 = arith.constant 0 : index
      %13 = arith.index_cast %12 : i32 to index
      %c0_20 = arith.constant 0 : index
      %14 = vector.load %arg3[%c0_19, %13, %c0_20] : memref<4x18x18xf32, #tpu.memory_space<vmem>>, vector<4x10x18xf32>
      %15 = vector.extract_strided_slice %14 {offsets = [0, 0, 0], sizes = [4, 8, 16], strides = [1, 1, 1]} : vector<4x10x18xf32> to vector<4x8x16xf32>
      %16 = vector.extract_strided_slice %14 {offsets = [0, 0, 1], sizes = [4, 8, 16], strides = [1, 1, 1]} : vector<4x10x18xf32> to vector<4x8x16xf32>
      %17 = vector.extract_strided_slice %14 {offsets = [0, 0, 2], sizes = [4, 8, 16], strides = [1, 1, 1]} : vector<4x10x18xf32> to vector<4x8x16xf32>
      %18 = vector.extract_strided_slice %14 {offsets = [0, 1, 0], sizes = [4, 8, 16], strides = [1, 1, 1]} : vector<4x10x18xf32> to vector<4x8x16xf32>
      %19 = vector.extract_strided_slice %14 {offsets = [0, 1, 1], sizes = [4, 8, 16], strides = [1, 1, 1]} : vector<4x10x18xf32> to vector<4x8x16xf32>
      %20 = vector.extract_strided_slice %14 {offsets = [0, 1, 2], sizes = [4, 8, 16], strides = [1, 1, 1]} : vector<4x10x18xf32> to vector<4x8x16xf32>
      %21 = vector.extract_strided_slice %14 {offsets = [0, 2, 0], sizes = [4, 8, 16], strides = [1, 1, 1]} : vector<4x10x18xf32> to vector<4x8x16xf32>
      %22 = vector.extract_strided_slice %14 {offsets = [0, 2, 1], sizes = [4, 8, 16], strides = [1, 1, 1]} : vector<4x10x18xf32> to vector<4x8x16xf32>
      %23 = vector.extract_strided_slice %14 {offsets = [0, 2, 2], sizes = [4, 8, 16], strides = [1, 1, 1]} : vector<4x10x18xf32> to vector<4x8x16xf32>
      %24 = arith.minimumf %16, %17 : vector<4x8x16xf32>
      %25 = arith.maximumf %16, %17 : vector<4x8x16xf32>
      %26 = arith.minimumf %19, %20 : vector<4x8x16xf32>
      %27 = arith.maximumf %19, %20 : vector<4x8x16xf32>
      %28 = arith.minimumf %22, %23 : vector<4x8x16xf32>
      %29 = arith.maximumf %22, %23 : vector<4x8x16xf32>
      %30 = arith.minimumf %15, %24 : vector<4x8x16xf32>
      %31 = arith.maximumf %15, %24 : vector<4x8x16xf32>
      %32 = arith.minimumf %18, %26 : vector<4x8x16xf32>
      %33 = arith.maximumf %18, %26 : vector<4x8x16xf32>
      %34 = arith.minimumf %21, %28 : vector<4x8x16xf32>
      %35 = arith.maximumf %21, %28 : vector<4x8x16xf32>
      %36 = arith.minimumf %31, %25 : vector<4x8x16xf32>
      %37 = arith.maximumf %31, %25 : vector<4x8x16xf32>
      %38 = arith.minimumf %33, %27 : vector<4x8x16xf32>
      %39 = arith.maximumf %33, %27 : vector<4x8x16xf32>
      %40 = arith.minimumf %35, %29 : vector<4x8x16xf32>
      %41 = arith.maximumf %35, %29 : vector<4x8x16xf32>
      %42 = arith.maximumf %30, %32 : vector<4x8x16xf32>
      %43 = arith.minimumf %39, %41 : vector<4x8x16xf32>
      %44 = arith.minimumf %38, %40 : vector<4x8x16xf32>
      %45 = arith.maximumf %38, %40 : vector<4x8x16xf32>
      %46 = arith.maximumf %42, %34 : vector<4x8x16xf32>
      %47 = arith.maximumf %36, %44 : vector<4x8x16xf32>
      %48 = arith.minimumf %37, %43 : vector<4x8x16xf32>
      %49 = arith.minimumf %47, %45 : vector<4x8x16xf32>
      %50 = arith.minimumf %49, %48 : vector<4x8x16xf32>
      %51 = arith.maximumf %49, %48 : vector<4x8x16xf32>
      %52 = arith.maximumf %46, %50 : vector<4x8x16xf32>
      %53 = arith.minimumf %52, %51 : vector<4x8x16xf32>
      %c0_21 = arith.constant 0 : index
      %54 = arith.index_cast %12 : i32 to index
      %c0_22 = arith.constant 0 : index
      %55 = vector.load %arg2[%c0_21, %54, %c0_22] : memref<4x16x16xf32, #tpu.memory_space<vmem>>, vector<4x8x16xf32>
      tpu.vector_store %arg2[%c0_21, %54, %c0_22], %53 {strides = array<i32>} : memref<4x16x16xf32, #tpu.memory_space<vmem>>, vector<4x8x16xf32>,
    }
    %c2_i32_18 = arith.constant 2 : i32
    return
  }
  func.func @transform_0(%arg0: i32) -> (i32, i32, i32) {
    %c0_i32 = arith.constant 0 : i32
    %c0_i32_0 = arith.constant 0 : i32
    %c0_i32_1 = arith.constant 0 : i32
    return %arg0, %c0_i32, %c0_i32_0 : i32, i32, i32
  }
  func.func @transform_1(%arg0: i32) -> (i32, i32, i32) {
    %c0_i32 = arith.constant 0 : i32
    %c0_i32_0 = arith.constant 0 : i32
    %c0_i32_1 = arith.constant 0 : i32
    return %arg0, %c0_i32, %c0_i32_0 : i32, i32, i32
  }
}

</mosaic_0001>

<llo_original>
// kernel: tpu_custom_call.1
$region0: #{tpu_custom_call.1}
  #allocation0 [shape = 'u32[]', space=smem, size = 0x4, offset = 0x4, fixed_abs, tag = 'smem constant byte address 0x4 - core index']
  #allocation1 [shape = 'u32[72,128]{1,0:T(1,128)}', space=vmem, size = 0x9000, scoped, tag = 'internal scratch']
  #allocation2 [shape = 'f32[4,18,18]{2,1,0:T(8,128)}', space=vmem, size = 0xc000, scoped, tag = 'scratch operand']
  %s0 = inlined_call_operand.hbm [shape: f32[8,16,16], index: 0, kind: input, shape index: {}]
  %s1 = inlined_call_operand.hbm [shape: f32[8,16,16], index: 1, kind: output, shape index: {}]
  %s2 = sld [smem:[#allocation0]]
  $region48: #{tpu_custom_call.1} parent=0
    _
  %s4 = ssub.s32 1, %s2
  %s5 = scalar_select 0, %s4, %s2
  $region1: #{tpu_custom_call.1} parent=0
    #allocation3 [shape = 'u8[65536]{0}', space=vmem, size = 0x10000, scoped, tag = 'input window, operand 0']
    #allocation4 [shape = 's32[2]{0}', space=sflag, size = 0x8, scoped, tag = 'scoped memory for tpu_custom_call.1']
    #allocation5 [shape = 's32[2]{0}', space=sflag, size = 0x8, scoped, tag = 'scoped memory for tpu_custom_call.1']
    #allocation6 [shape = 'u8[65536]{0}', space=vmem, size = 0x10000, scoped, tag = 'output window, operand 0']
    %6 = vsyncpa [#allocation4], 0
    %s7 = scalar_lea.sflag [#allocation4], 1
    %8 = vsyncpa %s7, 0
    %9 = vsyncpa [#allocation5], 0
    %s10 = scalar_lea.sflag [#allocation5], 1
    %11 = vsyncpa %s10, 0
    loop: start=0, step=1, limit=4
    $region2: #{tpu_custom_call.1} parent=1 // loop_pre_header
      _
    $region3: #{tpu_custom_call.1} parent=1 // loop_header
      %s13 = sphi 0, %s17
      %p14 = scmp.ge.s32.totalorder %s13, 4
      %s23 = sphi 0, %s25
      %s26 = sphi 0, %s23
      %s27 = sphi 0, %s26
      %s43 = sphi 0, %s27
      %s49 = sphi 0, %s51
      %s52 = sphi 0, %s49
      %s53 = sphi 0, %s52
      %s69 = sphi 0, %s53
    $region4: #{tpu_custom_call.1} parent=1 // loop_header_branch
      %16 = sbr.rel (%p14) target = $region8
    $region5: #{tpu_custom_call.1} parent=1 // loop_body
      %s18 = ssub.s32 %s13, 1
      %s19 = ssub.s32 %s13, 2
      %s20 = sadd.s32 %s13, 1
      %s21 = ssub.s32 %s13, %s20
      %p22 = scmp.eq.s32.totalorder %s21, 0
      %s24 = sadd.s32 %s23, 1
      %s25 = scalar_select %p22, %s23, %s24
      %p28 = pneg %p22
      %p29 = scmp.eq.s32.totalorder %s13, 1
      %p30 = por %p28, %p29
      %p31 = scmp.ne.s32.totalorder %s23, %s26
      %p32 = scmp.eq.s32.totalorder %s13, 0
      %p33 = por %p31, %p32
      %p34 = scmp.ne.s32.totalorder %s23, %s26
      %p35 = scmp.eq.s32.totalorder %s18, 1
      %p36 = por %p34, %p35
      %p37 = scmp.ne.s32.totalorder %s26, %s27
      %p38 = scmp.eq.s32.totalorder %s18, 0
      %p39 = por %p37, %p38
      %p40 = scmp.ne.s32.totalorder %s26, %s27
      %p41 = scmp.eq.s32.totalorder %s19, 1
      %p42 = por %p40, %p41
      %p44 = scmp.ne.s32.totalorder %s27, %s43
      %p45 = scmp.eq.s32.totalorder %s19, 0
      %p46 = por %p44, %p45
      %s47 = ssub.s32 %s13, %s20
      %p48 = scmp.eq.s32.totalorder %s47, 0
      %s50 = sadd.s32 %s49, 1
      %s51 = scalar_select %p48, %s49, %s50
      %p54 = pneg %p48
      %p55 = scmp.eq.s32.totalorder %s13, 1
      %p56 = por %p54, %p55
      %p57 = scmp.ne.s32.totalorder %s49, %s52
      %p58 = scmp.eq.s32.totalorder %s13, 0
      %p59 = por %p57, %p58
      %p60 = scmp.ne.s32.totalorder %s49, %s52
      %p61 = scmp.eq.s32.totalorder %s18, 1
      %p62 = por %p60, %p61
      %p63 = scmp.ne.s32.totalorder %s52, %s53
      %p64 = scmp.eq.s32.totalorder %s18, 0
      %p65 = por %p63, %p64
      %p66 = scmp.ne.s32.totalorder %s52, %s53
      %p67 = scmp.eq.s32.totalorder %s19, 1
      %p68 = por %p66, %p67
      %p70 = scmp.ne.s32.totalorder %s53, %s69
      %p71 = scmp.eq.s32.totalorder %s19, 0
      %p72 = por %p70, %p71
      %p73 = scmp.le.s32.totalorder 1, %s13
      %p74 = scmp.lt.s32.totalorder %s13, 3
      %p75 = pnand %p73, %p74
      %p76 = pneg %p75
      // Predicated region
      $region9: #{tpu_custom_call.1} parent=5 // pred_check
        _
      $region10: #{tpu_custom_call.1} parent=5 // pred_check_branch
        %78 = sbr.rel (%p75) target = $region12
      $region11: #{tpu_custom_call.1} parent=5 // pred_region
        %s79 = ssub.s32 %s13, 1
      $region12: #{tpu_custom_call.1} parent=5 // pred_fallthru
        _
      %p80 = scmp.lt.s32.totalorder %s13, 2
      // Predicated region
      $region13: #{tpu_custom_call.1} parent=5 // pred_check
        %p81 = pneg %p80
      $region14: #{tpu_custom_call.1} parent=5 // pred_check_branch
        %83 = sbr.rel (%p81) target = $region16
      $region15: #{tpu_custom_call.1} parent=5 // pred_region
        // Predicated region
        $region17: #{tpu_custom_call.1} parent=15 // pred_check
          %p84 = pneg %p33
        $region18: #{tpu_custom_call.1} parent=15 // pred_check_branch
          %86 = sbr.rel (%p84) target = $region20
        $region19: #{tpu_custom_call.1} parent=15 // pred_region
          %s87 = sand.u32 %s23, 1
          %s88 = scalar_lea.sflag [#allocation4], %s87
          %s89 = sand.u32 %s23, 1
          %s90 = smul.addr %s89, 64
          %s91 = scalar_lea.vmem [#allocation3], %s90
          %s92 = smul.u32 4, %s13
          %94 = vsyncadd %s88, 0
          %s95 = smul.addr %s92, 2
          %s96 = smul.addr %s95, 8
          %s97 = scalar_lea.hbm %s0, %s96
          %s98 = sshll.u32 %s97, 4
          %s99 = int_to_ptr.hbm [resolvable:$true] %s98
          %s100 = sshll.u32 %s91, 4
          %s101 = int_to_ptr.vmem [resolvable:$true] %s100
          %106 = dma.hbm_to_vmem [thread:$0]  %s99, 1024, %s101, %s88, 128, 128, 8
        $region20: #{tpu_custom_call.1} parent=15 // pred_fallthru
          _
      $region16: #{tpu_custom_call.1} parent=5 // pred_fallthru
        _
      %p107 = scmp.le.s32.totalorder 1, %s13
      %p108 = scmp.lt.s32.totalorder %s13, 3
      %p109 = pnand %p107, %p108
      %p110 = pneg %p109
      // Predicated region
      $region21: #{tpu_custom_call.1} parent=5 // pred_check
        _
      $region22: #{tpu_custom_call.1} parent=5 // pred_check_branch
        %112 = sbr.rel (%p109) target = $region24
      $region23: #{tpu_custom_call.1} parent=5 // pred_region
        %s113 = ssub.s32 %s13, 1
        %s114 = sand.u32 %s26, 1
        %s115 = scalar_lea.sflag [#allocation4], %s114
        %s116 = sand.u32 %s26, 1
        %s117 = smul.addr %s116, 64
        %s118 = scalar_lea.vmem [#allocation3], %s117
        // Predicated region
        $region25: #{tpu_custom_call.1} parent=23 // pred_check
          %p119 = pneg %p39
        $region26: #{tpu_custom_call.1} parent=23 // pred_check_branch
          %121 = sbr.rel (%p119) target = $region28
        $region27: #{tpu_custom_call.1} parent=23 // pred_region
          %123 = dma.done %s115, 1024
        $region28: #{tpu_custom_call.1} parent=23 // pred_fallthru
          _
        %s124 = sand.u32 %s26, 1
        %s125 = scalar_lea.sflag [#allocation4], %s124
        %s126 = sand.u32 %s26, 1
        %s127 = smul.addr %s126, 64
        %s128 = scalar_lea.vmem [#allocation3], %s127
        %p129 = pneg %p39
        %p130 = pneg %p36
        %p131 = pneg %p65
        %p132 = pneg %p62
        %s133 = sand.u32 %s52, 1
        %s134 = scalar_lea.sflag [#allocation5], %s133
        %s135 = sand.u32 %s52, 1
        %s136 = smul.addr %s135, 64
        %s137 = scalar_lea.vmem [#allocation6], %s136
        %s138 = smul.u32 4, %s18
        %s139 = smul.u32 4, %s18
        %vm140 = vcmask 139264
        %141 = vst.msk [vmem:[#allocation2] sm:$0x1] %vm140, 0.0
        %142 = vst.msk [vmem:[#allocation2 + $0x18] sm:$0x1] %vm140, 0.0
        %143 = vst.msk [vmem:[#allocation2 + $0x30] sm:$0x1] %vm140, 0.0
        %144 = vst.msk [vmem:[#allocation2 + $0x48] sm:$0x1] %vm140, 0.0
        %145 = vst.msk [vmem:[#allocation2 + $0x11] sm:$0x1] %vm140, 0.0
        %146 = vst.msk [vmem:[#allocation2 + $0x29] sm:$0x1] %vm140, 0.0
        %147 = vst.msk [vmem:[#allocation2 + $0x41] sm:$0x1] %vm140, 0.0
        %148 = vst.msk [vmem:[#allocation2 + $0x59] sm:$0x1] %vm140, 0.0
        %vm149 = vcmask 7168
        %150 = vst.msk [vmem:[#allocation2] sm:$0xff] %vm149, 0.0
        %151 = vst.msk [vmem:[#allocation2 + $0x8] sm:$0xff] %vm149, 0.0
        %vm152 = vcmask 1024
        %153 = vst.msk [vmem:[#allocation2 + $0x10] sm:$0x3] %vm152, 0.0
        %154 = vst.msk [vmem:[#allocation2 + $0x18] sm:$0xff] %vm149, 0.0
        %155 = vst.msk [vmem:[#allocation2 + $0x20] sm:$0xff] %vm149, 0.0
        %156 = vst.msk [vmem:[#allocation2 + $0x28] sm:$0x3] %vm152, 0.0
        %157 = vst.msk [vmem:[#allocation2 + $0x30] sm:$0xff] %vm149, 0.0
        %158 = vst.msk [vmem:[#allocation2 + $0x38] sm:$0xff] %vm149, 0.0
        %159 = vst.msk [vmem:[#allocation2 + $0x40] sm:$0x3] %vm152, 0.0
        %160 = vst.msk [vmem:[#allocation2 + $0x48] sm:$0xff] %vm149, 0.0
        %161 = vst.msk [vmem:[#allocation2 + $0x50] sm:$0xff] %vm149, 0.0
        %162 = vst.msk [vmem:[#allocation2 + $0x58] sm:$0x3] %vm152, 0.0
        %vm163 = vcmask 146568
        %164 = vst.msk [vmem:[#allocation2] sm:$0xff] %vm163, 0.0
        %165 = vst.msk [vmem:[#allocation2 + $0x8] sm:$0xff] %vm163, 0.0
        %vm166 = vcmask 140424
        %167 = vst.msk [vmem:[#allocation2 + $0x10] sm:$0x3] %vm166, 0.0
        %168 = vst.msk [vmem:[#allocation2 + $0x18] sm:$0xff] %vm163, 0.0
        %169 = vst.msk [vmem:[#allocation2 + $0x20] sm:$0xff] %vm163, 0.0
        %170 = vst.msk [vmem:[#allocation2 + $0x28] sm:$0x3] %vm166, 0.0
        %171 = vst.msk [vmem:[#allocation2 + $0x30] sm:$0xff] %vm163, 0.0
        %172 = vst.msk [vmem:[#allocation2 + $0x38] sm:$0xff] %vm163, 0.0
        %173 = vst.msk [vmem:[#allocation2 + $0x40] sm:$0x3] %vm166, 0.0
        %174 = vst.msk [vmem:[#allocation2 + $0x48] sm:$0xff] %vm163, 0.0
        %175 = vst.msk [vmem:[#allocation2 + $0x50] sm:$0xff] %vm163, 0.0
        %176 = vst.msk [vmem:[#allocation2 + $0x58] sm:$0x3] %vm166, 0.0
        %v177 = vld [vmem:[%s118] sm:$0xff]
        %v178 = vld [vmem:[%s118 + $0x8] sm:$0xff]
        %v179 = vld [vmem:[%s118 + $0x10] sm:$0xff]
        %v180 = vld [vmem:[%s118 + $0x18] sm:$0xff]
        %v181 = vld [vmem:[%s118 + $0x20] sm:$0xff]
        %v182 = vld [vmem:[%s118 + $0x28] sm:$0xff]
        %v183 = vld [vmem:[%s118 + $0x30] sm:$0xff]
        %v184 = vld [vmem:[%s118 + $0x38] sm:$0xff]
        %193 = vrot.lane.b32.xlu0 %v177, 1
        %v194 = vpop.permute.xlu0 %193
        %195 = vrot.lane.b32.xlu0 %v178, 1
        %v196 = vpop.permute.xlu0 %195
        %197 = vrot.lane.b32.xlu0 %v179, 1
        %v198 = vpop.permute.xlu0 %197
        %199 = vrot.lane.b32.xlu0 %v180, 1
        %v200 = vpop.permute.xlu0 %199
        %201 = vrot.lane.b32.xlu0 %v181, 1
        %v202 = vpop.permute.xlu0 %201
        %203 = vrot.lane.b32.xlu0 %v182, 1
        %v204 = vpop.permute.xlu0 %203
        %205 = vrot.lane.b32.xlu0 %v183, 1
        %v206 = vpop.permute.xlu0 %205
        %207 = vrot.lane.b32.xlu0 %v184, 1
        %v208 = vpop.permute.xlu0 %207
        %vm217 = vcmask 138248
        %218 = vst.msk [vmem:[#allocation2 + $0x1] sm:$0xff] %vm217, %v194
        %219 = vst.msk [vmem:[#allocation2 + $0x9] sm:$0xff] %vm217, %v196
        %220 = vst.msk [vmem:[#allocation2 + $0x19] sm:$0xff] %vm217, %v198
        %221 = vst.msk [vmem:[#allocation2 + $0x21] sm:$0xff] %vm217, %v200
        %222 = vst.msk [vmem:[#allocation2 + $0x31] sm:$0xff] %vm217, %v202
        %223 = vst.msk [vmem:[#allocation2 + $0x39] sm:$0xff] %vm217, %v204
        %224 = vst.msk [vmem:[#allocation2 + $0x49] sm:$0xff] %vm217, %v206
        %225 = vst.msk [vmem:[#allocation2 + $0x51] sm:$0xff] %vm217, %v208
        loop: start=0, step=1, limit=2
        $region29: #{tpu_custom_call.1} parent=23 // loop_pre_header
          _
        $region30: #{tpu_custom_call.1} parent=23 // loop_header
          %s227 = sphi 0, %s231
          %p228 = scmp.ge.s32.totalorder %s227, 2
        $region31: #{tpu_custom_call.1} parent=23 // loop_header_branch
          %230 = sbr.rel (%p228) target = $region35
        $region32: #{tpu_custom_call.1} parent=23 // loop_body
          %s232 = smul.u32 %s227, 8
          %s233 = scalar_lea.vmem [#allocation2], %s232
          %v234 = vld [vmem:[%s233] sm:$0xff]
          %v235 = vld [vmem:[%s233 + $0x8] sm:$0x3]
          %v236 = vld [vmem:[%s233 + $0x18] sm:$0xff]
          %v237 = vld [vmem:[%s233 + $0x20] sm:$0x3]
          %v238 = vld [vmem:[%s233 + $0x30] sm:$0xff]
          %v239 = vld [vmem:[%s233 + $0x38] sm:$0x3]
          %v240 = vld [vmem:[%s233 + $0x48] sm:$0xff]
          %v241 = vld [vmem:[%s233 + $0x50] sm:$0x3]
          %246 = vrot.lane.b32.xlu0 %v234, 127
          %v247 = vpop.permute.xlu0 %246
          %248 = vrot.lane.b32.xlu0 %v236, 127
          %v249 = vpop.permute.xlu0 %248
          %250 = vrot.lane.b32.xlu0 %v238, 127
          %v251 = vpop.permute.xlu0 %250
          %252 = vrot.lane.b32.xlu0 %v240, 127
          %v253 = vpop.permute.xlu0 %252
          %v258 = vmin.f32 %v234, %v247
          %v259 = vmin.f32 %v236, %v249
          %v260 = vmin.f32 %v238, %v251
          %v261 = vmin.f32 %v240, %v253
          %v262 = vmax.f32 %v234, %v247
          %v263 = vmax.f32 %v236, %v249
          %v264 = vmax.f32 %v238, %v251
          %v265 = vmax.f32 %v240, %v253
          %270 = vrot.lane.b32.xlu0 %v235, 127
          %v271 = vpop.permute.xlu0 %270
          %272 = vrot.lane.b32.xlu0 %v237, 127
          %v273 = vpop.permute.xlu0 %272
          %274 = vrot.lane.b32.xlu0 %v239, 127
          %v275 = vpop.permute.xlu0 %274
          %276 = vrot.lane.b32.xlu0 %v241, 127
          %v277 = vpop.permute.xlu0 %276
          %v282 = vmin.f32 %v235, %v271
          %v283 = vmin.f32 %v237, %v273
          %v284 = vmin.f32 %v239, %v275
          %v285 = vmin.f32 %v241, %v277
          %v286 = vmax.f32 %v235, %v271
          %v287 = vmax.f32 %v237, %v273
          %v288 = vmax.f32 %v239, %v275
          %v289 = vmax.f32 %v241, %v277
          %294 = vrot.lane.b32.xlu0 %v258, 127
          %v295 = vpop.permute.xlu0 %294
          %296 = vrot.lane.b32.xlu0 %v259, 127
          %v297 = vpop.permute.xlu0 %296
          %298 = vrot.lane.b32.xlu0 %v260, 127
          %v299 = vpop.permute.xlu0 %298
          %300 = vrot.lane.b32.xlu0 %v261, 127
          %v301 = vpop.permute.xlu0 %300
          %v306 = vmin.f32 %v234, %v295
          %v307 = vmin.f32 %v236, %v297
          %v308 = vmin.f32 %v238, %v299
          %v309 = vmin.f32 %v240, %v301
          %v310 = vmax.f32 %v234, %v295
          %v311 = vmax.f32 %v236, %v297
          %v312 = vmax.f32 %v238, %v299
          %v313 = vmax.f32 %v240, %v301
          %318 = vrot.lane.b32.xlu0 %v282, 127
          %v319 = vpop.permute.xlu0 %318
          %320 = vrot.lane.b32.xlu0 %v283, 127
          %v321 = vpop.permute.xlu0 %320
          %322 = vrot.lane.b32.xlu0 %v284, 127
          %v323 = vpop.permute.xlu0 %322
          %324 = vrot.lane.b32.xlu0 %v285, 127
          %v325 = vpop.permute.xlu0 %324
          %v330 = vmin.f32 %v235, %v319
          %v331 = vmin.f32 %v237, %v321
          %v332 = vmin.f32 %v239, %v323
          %v333 = vmin.f32 %v241, %v325
          %v334 = vmax.f32 %v235, %v319
          %v335 = vmax.f32 %v237, %v321
          %v336 = vmax.f32 %v239, %v323
          %v337 = vmax.f32 %v241, %v325
          %342 = vrot.lane.b32.xlu0 %v262, 127
          %v343 = vpop.permute.xlu0 %342
          %344 = vrot.lane.b32.xlu0 %v263, 127
          %v345 = vpop.permute.xlu0 %344
          %346 = vrot.lane.b32.xlu0 %v264, 127
          %v347 = vpop.permute.xlu0 %346
          %348 = vrot.lane.b32.xlu0 %v265, 127
          %v349 = vpop.permute.xlu0 %348
          %v354 = vmin.f32 %v310, %v343
          %v355 = vmin.f32 %v311, %v345
          %v356 = vmin.f32 %v312, %v347
          %v357 = vmin.f32 %v313, %v349
          %v358 = vmax.f32 %v310, %v343
          %v359 = vmax.f32 %v311, %v345
          %v360 = vmax.f32 %v312, %v347
          %v361 = vmax.f32 %v313, %v349
          %366 = vrot.lane.b32.xlu0 %v286, 127
          %v367 = vpop.permute.xlu0 %366
          %368 = vrot.lane.b32.xlu0 %v287, 127
          %v369 = vpop.permute.xlu0 %368
          %370 = vrot.lane.b32.xlu0 %v288, 127
          %v371 = vpop.permute.xlu0 %370
          %372 = vrot.lane.b32.xlu0 %v289, 127
          %v373 = vpop.permute.xlu0 %372
          %v378 = vmin.f32 %v334, %v367
          %v379 = vmin.f32 %v335, %v369
          %v380 = vmin.f32 %v336, %v371
          %v381 = vmin.f32 %v337, %v373
          %v382 = vmax.f32 %v334, %v367
          %v383 = vmax.f32 %v335, %v369
          %v384 = vmax.f32 %v336, %v371
          %v385 = vmax.f32 %v337, %v373
          %vm394 = vcmask 1046528
          %v395 = vrot.slane %v306, 1
          %v396 = vrot.slane %v330, 1
          %v397 = vsel %vm394, %v395, %v396
          %v398 = vrot.slane %v307, 1
          %v399 = vrot.slane %v331, 1
          %v400 = vsel %vm394, %v398, %v399
          %v401 = vrot.slane %v308, 1
          %v402 = vrot.slane %v332, 1
          %v403 = vsel %vm394, %v401, %v402
          %v404 = vrot.slane %v309, 1
          %v405 = vrot.slane %v333, 1
          %v406 = vsel %vm394, %v404, %v405
          %v411 = vmax.f32 %v306, %v397
          %v412 = vmax.f32 %v307, %v400
          %v413 = vmax.f32 %v308, %v403
          %v414 = vmax.f32 %v309, %v406
          %v423 = vrot.slane %v358, 1
          %v424 = vrot.slane %v382, 1
          %v425 = vsel %vm394, %v423, %v424
          %v426 = vrot.slane %v359, 1
          %v427 = vrot.slane %v383, 1
          %v428 = vsel %vm394, %v426, %v427
          %v429 = vrot.slane %v360, 1
          %v430 = vrot.slane %v384, 1
          %v431 = vsel %vm394, %v429, %v430
          %v432 = vrot.slane %v361, 1
          %v433 = vrot.slane %v385, 1
          %v434 = vsel %vm394, %v432, %v433
          %v443 = vmin.f32 %v358, %v425
          %v444 = vmin.f32 %v382, %v424
          %v445 = vmin.f32 %v359, %v428
          %v446 = vmin.f32 %v383, %v427
          %v447 = vmin.f32 %v360, %v431
          %v448 = vmin.f32 %v384, %v430
          %v449 = vmin.f32 %v361, %v434
          %v450 = vmin.f32 %v385, %v433
          %v459 = vrot.slane %v354, 1
          %v460 = vrot.slane %v378, 1
          %v461 = vsel %vm394, %v459, %v460
          %v462 = vrot.slane %v355, 1
          %v463 = vrot.slane %v379, 1
          %v464 = vsel %vm394, %v462, %v463
          %v465 = vrot.slane %v356, 1
          %v466 = vrot.slane %v380, 1
          %v467 = vsel %vm394, %v465, %v466
          %v468 = vrot.slane %v357, 1
          %v469 = vrot.slane %v381, 1
          %v470 = vsel %vm394, %v468, %v469
          %v479 = vmin.f32 %v354, %v461
          %v480 = vmin.f32 %v378, %v460
          %v481 = vmin.f32 %v355, %v464
          %v482 = vmin.f32 %v379, %v463
          %v483 = vmin.f32 %v356, %v467
          %v484 = vmin.f32 %v380, %v466
          %v485 = vmin.f32 %v357, %v470
          %v486 = vmin.f32 %v381, %v469
          %v487 = vmax.f32 %v354, %v461
          %v488 = vmax.f32 %v378, %v460
          %v489 = vmax.f32 %v355, %v464
          %v490 = vmax.f32 %v379, %v463
          %v491 = vmax.f32 %v356, %v467
          %v492 = vmax.f32 %v380, %v466
          %v493 = vmax.f32 %v357, %v470
          %v494 = vmax.f32 %v381, %v469
          %vm495 = vcmask 1045504
          %v496 = vrot.slane %v306, 2
          %v497 = vrot.slane %v330, 2
          %v498 = vsel %vm495, %v496, %v497
          %v499 = vrot.slane %v307, 2
          %v500 = vrot.slane %v331, 2
          %v501 = vsel %vm495, %v499, %v500
          %v502 = vrot.slane %v308, 2
          %v503 = vrot.slane %v332, 2
          %v504 = vsel %vm495, %v502, %v503
          %v505 = vrot.slane %v309, 2
          %v506 = vrot.slane %v333, 2
          %v507 = vsel %vm495, %v505, %v506
          %v512 = vmax.f32 %v411, %v498
          %v513 = vmax.f32 %v412, %v501
          %v514 = vmax.f32 %v413, %v504
          %v515 = vmax.f32 %v414, %v507
          %v524 = vrot.slane %v479, 1
          %v525 = vrot.slane %v480, 1
          %v526 = vsel %vm394, %v524, %v525
          %v527 = vrot.slane %v481, 1
          %v528 = vrot.slane %v482, 1
          %v529 = vsel %vm394, %v527, %v528
          %v530 = vrot.slane %v483, 1
          %v531 = vrot.slane %v484, 1
          %v532 = vsel %vm394, %v530, %v531
          %v533 = vrot.slane %v485, 1
          %v534 = vrot.slane %v486, 1
          %v535 = vsel %vm394, %v533, %v534
          %v540 = vmax.f32 %v354, %v526
          %v541 = vmax.f32 %v355, %v529
          %v542 = vmax.f32 %v356, %v532
          %v543 = vmax.f32 %v357, %v535
          %v552 = vrot.slane %v443, 1
          %v553 = vrot.slane %v444, 1
          %v554 = vsel %vm394, %v552, %v553
          %v555 = vrot.slane %v445, 1
          %v556 = vrot.slane %v446, 1
          %v557 = vsel %vm394, %v555, %v556
          %v558 = vrot.slane %v447, 1
          %v559 = vrot.slane %v448, 1
          %v560 = vsel %vm394, %v558, %v559
          %v561 = vrot.slane %v449, 1
          %v562 = vrot.slane %v450, 1
          %v563 = vsel %vm394, %v561, %v562
          %v568 = vmin.f32 %v358, %v554
          %v569 = vmin.f32 %v359, %v557
          %v570 = vmin.f32 %v360, %v560
          %v571 = vmin.f32 %v361, %v563
          %v580 = vrot.slane %v487, 1
          %v581 = vrot.slane %v488, 1
          %v582 = vsel %vm394, %v580, %v581
          %v583 = vrot.slane %v489, 1
          %v584 = vrot.slane %v490, 1
          %v585 = vsel %vm394, %v583, %v584
          %v586 = vrot.slane %v491, 1
          %v587 = vrot.slane %v492, 1
          %v588 = vsel %vm394, %v586, %v587
          %v589 = vrot.slane %v493, 1
          %v590 = vrot.slane %v494, 1
          %v591 = vsel %vm394, %v589, %v590
          %v596 = vmin.f32 %v540, %v582
          %v597 = vmin.f32 %v541, %v585
          %v598 = vmin.f32 %v542, %v588
          %v599 = vmin.f32 %v543, %v591
          %v600 = vmin.f32 %v596, %v568
          %v601 = vmin.f32 %v597, %v569
          %v602 = vmin.f32 %v598, %v570
          %v603 = vmin.f32 %v599, %v571
          %v604 = vmax.f32 %v596, %v568
          %v605 = vmax.f32 %v597, %v569
          %v606 = vmax.f32 %v598, %v570
          %v607 = vmax.f32 %v599, %v571
          %v608 = vmax.f32 %v512, %v600
          %v609 = vmax.f32 %v513, %v601
          %v610 = vmax.f32 %v514, %v602
          %v611 = vmax.f32 %v515, %v603
          %v612 = vmin.f32 %v608, %v604
          %v613 = vmin.f32 %v609, %v605
          %v614 = vmin.f32 %v610, %v606
          %v615 = vmin.f32 %v611, %v607
          %s616 = scalar_lea.vmem %s137, %s232 [#allocation6]
          %vm617 = vcmask 130048
          %618 = vst.msk [vmem:[%s616] sm:$0xff] %vm617, %v612
          %619 = vst.msk [vmem:[%s616 + $0x10] sm:$0xff] %vm617, %v613
          %620 = vst.msk [vmem:[%s616 + $0x20] sm:$0xff] %vm617, %v614
          %621 = vst.msk [vmem:[%s616 + $0x30] sm:$0xff] %vm617, %v615
        $region33: #{tpu_custom_call.1} parent=23 // loop_footer
          %s231 = sadd.s32 1, %s227
        $region34: #{tpu_custom_call.1} parent=23 // loop_footer_branch
          %226 = sbr.rel target = $region30
        $region35: #{tpu_custom_call.1} parent=23 // loop_exit
          _
        %s622 = sand.u32 %s52, 1
        %s623 = scalar_lea.sflag [#allocation5], %s622
        %s624 = sand.u32 %s52, 1
        %s625 = smul.addr %s624, 64
        %s626 = scalar_lea.vmem [#allocation6], %s625
        // Predicated region
        $region36: #{tpu_custom_call.1} parent=23 // pred_check
          %p627 = pneg %p62
        $region37: #{tpu_custom_call.1} parent=23 // pred_check_branch
          %629 = sbr.rel (%p627) target = $region39
        $region38: #{tpu_custom_call.1} parent=23 // pred_region
          %s630 = smul.u32 4, %s18
          %632 = vsyncadd %s623, 0
          %s633 = smul.addr %s630, 2
          %s634 = smul.addr %s633, 8
          %s635 = scalar_lea.hbm %s1, %s634
          %s636 = sshll.u32 %s626, 4
          %s637 = int_to_ptr.vmem [resolvable:$true] %s636
          %s638 = sshll.u32 %s635, 4
          %s639 = int_to_ptr.hbm [resolvable:$true] %s638
          %644 = dma.vmem_to_hbm [thread:$0]  %s637, 1024, %s639, %s623, 128, 128, 8
        $region39: #{tpu_custom_call.1} parent=23 // pred_fallthru
          _
      $region24: #{tpu_custom_call.1} parent=5 // pred_fallthru
        _
      %p645 = scmp.le.s32.totalorder 2, %s13
      // Predicated region
      $region40: #{tpu_custom_call.1} parent=5 // pred_check
        %p646 = pneg %p645
      $region41: #{tpu_custom_call.1} parent=5 // pred_check_branch
        %648 = sbr.rel (%p646) target = $region43
      $region42: #{tpu_custom_call.1} parent=5 // pred_region
        %s649 = ssub.s32 %s13, 2
        // Predicated region
        $region44: #{tpu_custom_call.1} parent=42 // pred_check
          %p650 = pneg %p68
        $region45: #{tpu_custom_call.1} parent=42 // pred_check_branch
          %652 = sbr.rel (%p650) target = $region47
        $region46: #{tpu_custom_call.1} parent=42 // pred_region
          %s653 = sand.u32 %s53, 1
          %s654 = scalar_lea.sflag [#allocation5], %s653
          %s655 = sand.u32 %s53, 1
          %s656 = smul.addr %s655, 64
          %s657 = scalar_lea.vmem [#allocation6], %s656
          %659 = dma.done %s654, 1024
        $region47: #{tpu_custom_call.1} parent=42 // pred_fallthru
          _
      $region43: #{tpu_custom_call.1} parent=5 // pred_fallthru
        _
    $region6: #{tpu_custom_call.1} parent=1 // loop_footer
      %s17 = sadd.s32 1, %s13
    $region7: #{tpu_custom_call.1} parent=1 // loop_footer_branch
      %12 = sbr.rel target = $region3
    $region8: #{tpu_custom_call.1} parent=1 // loop_exit
      _
    %660 = vsyncpa [#allocation4], 1
    %s661 = scalar_lea.sflag [#allocation4], 1
    %662 = vsyncpa %s661, 1
    %663 = vsyncpa [#allocation5], 1
    %s664 = scalar_lea.sflag [#allocation5], 1
    %665 = vsyncpa %s664, 1

</llo_original>
